<compile_context>
chip_gen: v7x
topology: tpu7x:2x2x1
jax: 0.10.0
libtpu: 0.0.40
codegen_flags: <defaults>
</compile_context>

<pallas_src>
import functools

import jax
import jax.numpy as jnp
from jax.experimental import pallas as pl
from jax.experimental.pallas import tpu as pltpu


def _round_up(v, m):
    return (v + m - 1) // m * m


def _vmem_limit_bytes():
    """Scoped-VMEM limit derived from the chip (v5e/v6e: 128 MiB, v7x: 64 MiB)."""
    try:
        cap = int(pltpu.get_tpu_info().vmem_capacity_bytes)
    except Exception:
        cap = 64 * 1024 * 1024          # conservative (v7x-sized) fallback
    return max(16 * 1024 * 1024, min((cap * 3) // 4, 96 * 1024 * 1024))


def _pick_row_tile(n_rows, bytes_per_row, budget, max_rows=None):
    """Largest row tile that divides n_rows, is a multiple of 8 (or the whole
    array) and keeps the lane-padded, double-buffered working set under budget."""
    cap = n_rows if max_rows is None else min(max_rows, n_rows)
    if n_rows <= cap and n_rows * bytes_per_row <= budget:
        return n_rows
    best = None
    for t in (16384, 8192, 4096, 2048, 1024, 512, 384, 256, 192, 128, 96, 64,
              48, 32, 16, 8):
        if t <= cap and n_rows % t == 0:
            if best is None:
                best = t                 # largest legal tile (may exceed budget)
            if t * bytes_per_row <= budget:
                return t
    return best if best is not None else n_rows   # vmem_limit_bytes still guards


def _relu_conv_stats_kernel(x1_ref, x2_ref, w1_ref, w2_ref,
                            y_ref, sum_ref, sq_ref):
    """Fused ReLU + two 1x1-conv matmuls + per-channel sum / sum-of-squares."""
    step = pl.program_id(0)

    a1 = jnp.maximum(x1_ref[...], 0.0)            # bf16 (or f32) activations
    a2 = jnp.maximum(x2_ref[...], 0.0)
    y1 = jnp.dot(a1, w1_ref[...], preferred_element_type=jnp.float32)
    y2 = jnp.dot(a2, w2_ref[...], preferred_element_type=jnp.float32)
    y = jnp.concatenate([y1, y2], axis=-1)        # (tm, C_out) f32
    # TODO(synk): for C_out < 128 relayout this store to a flat 128-lane slab so
    # the y writeback is lane-dense (narrow masked stores otherwise).
    y_ref[...] = y.astype(y_ref.dtype)
    # TODO(synk): on v5e, making y bf16 would halve the remaining y traffic
    # (stats below are accumulated from the f32 matmul results regardless).

    @pl.when(step == 0)
    def _():
        sum_ref[...] = jnp.zeros_like(sum_ref)
        sq_ref[...] = jnp.zeros_like(sq_ref)

    tm, c_out = y.shape
    if tm % 8 == 0:
        # Fold rows onto the 8 sublanes of the accumulator block (VPU-only adds,
        # no cross-sublane reduction per step); the 8 partial rows are summed
        # once in the XLA finalize glue.
        y3 = y.reshape(tm // 8, 8, c_out)
        sum_ref[...] += jnp.sum(y3, axis=0)
        sq_ref[...] += jnp.sum(y3 * y3, axis=0)
    else:
        sum_ref[0:1, :] += jnp.sum(y, axis=0, keepdims=True)
        sq_ref[0:1, :] += jnp.sum(y * y, axis=0, keepdims=True)


@functools.partial(jax.jit,
                   static_argnames=("eps", "compute_dtype", "max_tile_rows"))
def factorized_reduce(x, w1, w2, gamma, beta, *, eps=1e-5,
                      compute_dtype=jnp.bfloat16, max_tile_rows=None):
    """x: (N, C_in, H, W) f32 NCHW (PyTorch layout).
    w1, w2: (C_out//2, C_in, 1, 1).  Returns (N, C_out, H//2, W//2) f32."""
    N, C_in, H, W = x.shape
    assert H % 2 == 0 and W % 2 == 0, "even spatial dims required (as in DARTS)"
    C_half = w1.shape[0]
    assert w2.shape[0] == C_half and w1.shape[1] == C_in
    C_out = 2 * C_half
    Ho, Wo = H // 2, W // 2
    M = N * Ho * Wo

    # ---- XLA glue: strided even/odd sampling to channels-last (compute dtype) --
    # TODO(synk): the remaining input-side HBM round trip (write+read of x1/x2)
    # could be removed by feeding NCHW x straight into the kernel and doing the
    # stride-2 de-interleave with an in-kernel strided slice or strided DMA.
    x_nhwc = jnp.transpose(x, (0, 2, 3, 1))
    x1 = x_nhwc[:, ::2, ::2, :].reshape(M, C_in).astype(compute_dtype)
    x2 = x_nhwc[:, 1::2, 1::2, :].reshape(M, C_in).astype(compute_dtype)
    w1m = jnp.transpose(w1.reshape(C_half, C_in), (1, 0)).astype(compute_dtype)
    w2m = jnp.transpose(w2.reshape(C_half, C_in), (1, 0)).astype(compute_dtype)

    # ---- tiling: lane-padded, double-buffered working set per row -------------
    vmem_limit = _vmem_limit_bytes()
    in_bytes = jnp.dtype(compute_dtype).itemsize
    bytes_per_row = (2 * 2 * _round_up(C_in, 128) * in_bytes     # x1 + x2 (double-buffered)
                     + 2 * _round_up(C_out, 128) * 4             # y (double-buffered)
                     + 2 * _round_up(C_out, 128) * 4)            # f32 temporaries / slack
    tm = _pick_row_tile(M, bytes_per_row, vmem_limit // 2, max_rows=max_tile_rows)
    assert M % tm == 0
    grid = (M // tm,)

    # TODO(synk): on v7x, an outer size-2 CORE_PARALLEL axis with per-core
    # partial-stat blocks would engage both TensorCores; omitted here (1-TC
    # chips gain nothing and the kernel is HBM-bound anyway).
    y, ssum, ssq = pl.pallas_call(
        _relu_conv_stats_kernel,
        out_shape=(jax.ShapeDtypeStruct((M, C_out), jnp.float32),
                   jax.ShapeDtypeStruct((8, C_out), jnp.float32),
                   jax.ShapeDtypeStruct((8, C_out), jnp.float32)),
        grid_spec=pltpu.PrefetchScalarGridSpec(
            num_scalar_prefetch=0,
            grid=grid,
            in_specs=[
                pl.BlockSpec((tm, C_in), lambda i: (i, 0)),
                pl.BlockSpec((tm, C_in), lambda i: (i, 0)),
                pl.BlockSpec((C_in, C_half), lambda i: (0, 0)),   # tiny constant weights
                pl.BlockSpec((C_in, C_half), lambda i: (0, 0)),
            ],
            out_specs=(
                pl.BlockSpec((tm, C_out), lambda i: (i, 0)),
                pl.BlockSpec((8, C_out), lambda i: (0, 0)),       # resident accumulators
                pl.BlockSpec((8, C_out), lambda i: (0, 0)),
            )),
        compiler_params=pltpu.CompilerParams(
            dimension_semantics=("arbitrary",),   # stats accumulate across the grid
            vmem_limit_bytes=vmem_limit),
    )(x1, x2, w1m, w2m)

    # ---- finalize BN batch stats (tiny scalar glue) ---------------------------
    # PyTorch BN (training mode) normalizes with the biased batch variance.
    total = jnp.sum(ssum, axis=0)
    totsq = jnp.sum(ssq, axis=0)
    mean = total / M
    var = jnp.maximum(totsq / M - mean * mean, 0.0)   # clamp against cancellation
    inv = jax.lax.rsqrt(var + eps)
    scale = gamma.astype(jnp.float32) * inv
    shift = beta.astype(jnp.float32) - mean * scale

    # ---- BN FMA fused by XLA into the single NHWC->NCHW output transpose ------
    out_nhwc = y.reshape(N, Ho, Wo, C_out) * scale + shift
    return jnp.transpose(out_nhwc, (0, 3, 1, 2))


def _reference(x, w1, w2, gamma, beta, eps=1e-5, compute_dtype=jnp.float32):
    """Pure-JAX reference reproducing the PyTorch forward (training-mode BN),
    with the conv operands rounded to `compute_dtype` to match the kernel."""
    f32 = jnp.float32
    xr = jnp.maximum(x, 0.0)
    C_half = w1.shape[0]
    w1m = w1.reshape(C_half, -1).astype(compute_dtype).astype(f32)
    w2m = w2.reshape(C_half, -1).astype(compute_dtype).astype(f32)
    x1 = xr[:, :, ::2, ::2].astype(compute_dtype).astype(f32)
    x2 = xr[:, :, 1::2, 1::2].astype(compute_dtype).astype(f32)
    hp = jax.lax.Precision.HIGHEST
    y1 = jnp.einsum('nchw,oc->nohw', x1, w1m, precision=hp)
    y2 = jnp.einsum('nchw,oc->nohw', x2, w2m, precision=hp)
    y = jnp.concatenate([y1, y2], axis=1)
    mean = y.mean(axis=(0, 2, 3), keepdims=True)
    var = y.var(axis=(0, 2, 3), keepdims=True)   # biased
    yhat = (y - mean) * jax.lax.rsqrt(var + eps)
    return yhat * gamma.reshape(1, -1, 1, 1) + beta.reshape(1, -1, 1, 1)


if __name__ == "__main__":
    key = jax.random.PRNGKey(0)
    kx, k1, k2, kg, kb = jax.random.split(key, 5)

    # ---- main small config (matches the module defaults) ----------------------
    N, C_in, H, W = 2, 4, 16, 16
    C_out = 8
    C_half = C_out // 2
    x = jax.random.normal(kx, (N, C_in, H, W), dtype=jnp.float32)
    w1 = 0.1 * jax.random.normal(k1, (C_half, C_in, 1, 1), dtype=jnp.float32)
    w2 = 0.1 * jax.random.normal(k2, (C_half, C_in, 1, 1), dtype=jnp.float32)
    gamma = 1.0 + 0.1 * jax.random.normal(kg, (C_out,), dtype=jnp.float32)
    beta = 0.1 * jax.random.normal(kb, (C_out,), dtype=jnp.float32)

    ref_bf16 = _reference(x, w1, w2, gamma, beta, compute_dtype=jnp.bfloat16)
    ref_f32 = _reference(x, w1, w2, gamma, beta, compute_dtype=jnp.float32)

    out = jax.block_until_ready(factorized_reduce(x, w1, w2, gamma, beta))
    assert out.shape == (N, C_out, H // 2, W // 2)
    assert jnp.allclose(out, ref_bf16, atol=2e-3, rtol=2e-3), \
        float(jnp.max(jnp.abs(out - ref_bf16)))
    assert jnp.allclose(out, ref_f32, atol=5e-2, rtol=5e-2), \
        float(jnp.max(jnp.abs(out - ref_f32)))

    # f32 compute path + small tiles to exercise multi-block stats accumulation.
    out_f32 = jax.block_until_ready(
        factorized_reduce(x, w1, w2, gamma, beta,
                          compute_dtype=jnp.float32, max_tile_rows=32))
    assert jnp.allclose(out_f32, ref_f32, atol=1e-4, rtol=1e-4), \
        float(jnp.max(jnp.abs(out_f32 - ref_f32)))

    # Wider-channel config (C_out = 128, lane-dense output).
    N2, C_in2, H2, W2, C_out2 = 2, 16, 8, 8, 128
    kx2, k12, k22 = jax.random.split(jax.random.PRNGKey(1), 3)
    x_b = jax.random.normal(kx2, (N2, C_in2, H2, W2), dtype=jnp.float32)
    w1_b = 0.1 * jax.random.normal(k12, (C_out2 // 2, C_in2, 1, 1), dtype=jnp.float32)
    w2_b = 0.1 * jax.random.normal(k22, (C_out2 // 2, C_in2, 1, 1), dtype=jnp.float32)
    g_b = jnp.ones((C_out2,), dtype=jnp.float32)
    b_b = jnp.zeros((C_out2,), dtype=jnp.float32)
    out_b = jax.block_until_ready(factorized_reduce(x_b, w1_b, w2_b, g_b, b_b))
    ref_b = _reference(x_b, w1_b, w2_b, g_b, b_b, compute_dtype=jnp.bfloat16)
    assert jnp.allclose(out_b, ref_b, atol=2e-3, rtol=2e-3), \
        float(jnp.max(jnp.abs(out_b - ref_b)))

    print("KERNEL_OK")
</pallas_src>

<mosaic_0001>
module attributes {stable_mosaic.version = 11 : i64} {
  func.func @_relu_conv_stats_kernel(%arg0: i32, %arg1: memref<128x4xbf16, #tpu.memory_space<vmem>>, %arg2: memref<128x4xbf16, #tpu.memory_space<vmem>>, %arg3: memref<4x4xbf16, #tpu.memory_space<vmem>>, %arg4: memref<4x4xbf16, #tpu.memory_space<vmem>>, %arg5: memref<128x8xf32, #tpu.memory_space<vmem>>, %arg6: memref<8x8xf32, #tpu.memory_space<vmem>>, %arg7: memref<8x8xf32, #tpu.memory_space<vmem>>) attributes {dimension_semantics = [#tpu.dimension_semantics<arbitrary>], iteration_bounds = array<i64: 1>, scalar_prefetch = 0 : i64, scratch_operands = 0 : i64, tpu.core_type = #tpu.core_type<tc>, window_params = [{transform_indices = @transform_0, window_bounds = array<i64: 128, 4>}, {transform_indices = @transform_1, window_bounds = array<i64: 128, 4>}, {pipeline_mode = #tpu.pipeline_mode<synchronous>, transform_indices = @transform_2, window_bounds = array<i64: 4, 4>}, {pipeline_mode = #tpu.pipeline_mode<synchronous>, transform_indices = @transform_3, window_bounds = array<i64: 4, 4>}, {transform_indices = @transform_4, window_bounds = array<i64: 128, 8>}, {pipeline_mode = #tpu.pipeline_mode<synchronous>, transform_indices = @transform_5, window_bounds = array<i64: 8, 8>}, {pipeline_mode = #tpu.pipeline_mode<synchronous>, transform_indices = @transform_6, window_bounds = array<i64: 8, 8>}]} {
    %c0 = arith.constant 0 : index
    %c0_0 = arith.constant 0 : index
    %0 = vector.load %arg1[%c0, %c0_0] : memref<128x4xbf16, #tpu.memory_space<vmem>>, vector<128x4xbf16>
    %cst = arith.constant 0.000000e+00 : bf16
    %1 = vector.broadcast %cst : bf16 to vector<128x4xbf16>
    %2 = arith.maximumf %0, %1 : vector<128x4xbf16>
    %c0_1 = arith.constant 0 : index
    %c0_2 = arith.constant 0 : index
    %3 = vector.load %arg2[%c0_1, %c0_2] : memref<128x4xbf16, #tpu.memory_space<vmem>>, vector<128x4xbf16>
    %cst_3 = arith.constant 0.000000e+00 : bf16
    %4 = vector.broadcast %cst_3 : bf16 to vector<128x4xbf16>
    %5 = arith.maximumf %3, %4 : vector<128x4xbf16>
    %c0_4 = arith.constant 0 : index
    %c0_5 = arith.constant 0 : index
    %6 = vector.load %arg3[%c0_4, %c0_5] : memref<4x4xbf16, #tpu.memory_space<vmem>>, vector<4x4xbf16>
    %cst_6 = arith.constant dense<0.000000e+00> : vector<128x4xf32>
    %7 = tpu.matmul %2, %6, %cst_6 {dimension_numbers = #tpu.dot_dimension_numbers<[1], [0], [0], [1], [0, 0, 1, 1], [], []>} : vector<128x4xbf16>, vector<4x4xbf16>, vector<128x4xf32> -> vector<128x4xf32>
    %c0_7 = arith.constant 0 : index
    %c0_8 = arith.constant 0 : index
    %8 = vector.load %arg4[%c0_7, %c0_8] : memref<4x4xbf16, #tpu.memory_space<vmem>>, vector<4x4xbf16>
    %cst_9 = arith.constant dense<0.000000e+00> : vector<128x4xf32>
    %9 = tpu.matmul %5, %8, %cst_9 {dimension_numbers = #tpu.dot_dimension_numbers<[1], [0], [0], [1], [0, 0, 1, 1], [], []>} : vector<128x4xbf16>, vector<4x4xbf16>, vector<128x4xf32> -> vector<128x4xf32>
    %10 = tpu.concatenate %7, %9 in 1 : vector<128x4xf32>, vector<128x4xf32> -> vector<128x8xf32>
    %c0_10 = arith.constant 0 : index
    %c0_11 = arith.constant 0 : index
    %11 = vector.load %arg5[%c0_10, %c0_11] : memref<128x8xf32, #tpu.memory_space<vmem>>, vector<128x8xf32>
    tpu.vector_store %arg5[%c0_10, %c0_11], %10 {strides = array<i32>} : memref<128x8xf32, #tpu.memory_space<vmem>>, vector<128x8xf32>,
    %c0_i32 = arith.constant 0 : i32
    %12 = arith.cmpi eq, %arg0, %c0_i32 : i32
    %13 = arith.extui %12 : i1 to i32
    %c0_i32_12 = arith.constant 0 : i32
    %14 = arith.cmpi ne, %13, %c0_i32_12 : i32
    scf.if %14 {
      %cst_23 = arith.constant 0.000000e+00 : f32
      %25 = vector.broadcast %cst_23 : f32 to vector<8x8xf32>
      %c0_24 = arith.constant 0 : index
      %c0_25 = arith.constant 0 : index
      %26 = vector.load %arg6[%c0_24, %c0_25] : memref<8x8xf32, #tpu.memory_space<vmem>>, vector<8x8xf32>
      tpu.vector_store %arg6[%c0_24, %c0_25], %25 {strides = array<i32>} : memref<8x8xf32, #tpu.memory_space<vmem>>, vector<8x8xf32>,
      %cst_26 = arith.constant 0.000000e+00 : f32
      %27 = vector.broadcast %cst_26 : f32 to vector<8x8xf32>
      %c0_27 = arith.constant 0 : index
      %c0_28 = arith.constant 0 : index
      %28 = vector.load %arg7[%c0_27, %c0_28] : memref<8x8xf32, #tpu.memory_space<vmem>>, vector<8x8xf32>
      tpu.vector_store %arg7[%c0_27, %c0_28], %27 {strides = array<i32>} : memref<8x8xf32, #tpu.memory_space<vmem>>, vector<8x8xf32>,
    } else {
    }
    %15 = vector.shape_cast %10 : vector<128x8xf32> to vector<16x8x8xf32>
    %c0_13 = arith.constant 0 : index
    %c0_14 = arith.constant 0 : index
    %16 = vector.load %arg6[%c0_13, %c0_14] : memref<8x8xf32, #tpu.memory_space<vmem>>, vector<8x8xf32>
    %cst_15 = arith.constant dense<0.000000e+00> : vector<8x8xf32>
    %17 = vector.multi_reduction <add>, %15, %cst_15 [0] : vector<16x8x8xf32> to vector<8x8xf32>
    %18 = arith.addf %16, %17 : vector<8x8xf32>
    %c0_16 = arith.constant 0 : index
    %c0_17 = arith.constant 0 : index
    %19 = vector.load %arg6[%c0_16, %c0_17] : memref<8x8xf32, #tpu.memory_space<vmem>>, vector<8x8xf32>
    tpu.vector_store %arg6[%c0_16, %c0_17], %18 {strides = array<i32>} : memref<8x8xf32, #tpu.memory_space<vmem>>, vector<8x8xf32>,
    %c0_18 = arith.constant 0 : index
    %c0_19 = arith.constant 0 : index
    %20 = vector.load %arg7[%c0_18, %c0_19] : memref<8x8xf32, #tpu.memory_space<vmem>>, vector<8x8xf32>
    %21 = arith.mulf %15, %15 : vector<16x8x8xf32>
    %cst_20 = arith.constant dense<0.000000e+00> : vector<8x8xf32>
    %22 = vector.multi_reduction <add>, %21, %cst_20 [0] : vector<16x8x8xf32> to vector<8x8xf32>
    %23 = arith.addf %20, %22 : vector<8x8xf32>
    %c0_21 = arith.constant 0 : index
    %c0_22 = arith.constant 0 : index
    %24 = vector.load %arg7[%c0_21, %c0_22] : memref<8x8xf32, #tpu.memory_space<vmem>>, vector<8x8xf32>
    tpu.vector_store %arg7[%c0_21, %c0_22], %23 {strides = array<i32>} : memref<8x8xf32, #tpu.memory_space<vmem>>, vector<8x8xf32>,
    return
  }
  func.func @transform_0(%arg0: i32) -> (i32, i32) {
    %c0_i32 = arith.constant 0 : i32
    %c0_i32_0 = arith.constant 0 : i32
    return %arg0, %c0_i32 : i32, i32
  }
  func.func @transform_1(%arg0: i32) -> (i32, i32) {
    %c0_i32 = arith.constant 0 : i32
    %c0_i32_0 = arith.constant 0 : i32
    return %arg0, %c0_i32 : i32, i32
  }
  func.func @transform_2(%arg0: i32) -> (i32, i32) {
    %c0_i32 = arith.constant 0 : i32
    %c0_i32_0 = arith.constant 0 : i32
    %c0_i32_1 = arith.constant 0 : i32
    return %c0_i32, %c0_i32_0 : i32, i32
  }
  func.func @transform_3(%arg0: i32) -> (i32, i32) {
    %c0_i32 = arith.constant 0 : i32
    %c0_i32_0 = arith.constant 0 : i32
    %c0_i32_1 = arith.constant 0 : i32
    return %c0_i32, %c0_i32_0 : i32, i32
  }
  func.func @transform_4(%arg0: i32) -> (i32, i32) {
    %c0_i32 = arith.constant 0 : i32
    %c0_i32_0 = arith.constant 0 : i32
    return %arg0, %c0_i32 : i32, i32
  }
  func.func @transform_5(%arg0: i32) -> (i32, i32) {
    %c0_i32 = arith.constant 0 : i32
    %c0_i32_0 = arith.constant 0 : i32
    %c0_i32_1 = arith.constant 0 : i32
    return %c0_i32, %c0_i32_0 : i32, i32
  }
  func.func @transform_6(%arg0: i32) -> (i32, i32) {
    %c0_i32 = arith.constant 0 : i32
    %c0_i32_0 = arith.constant 0 : i32
    %c0_i32_1 = arith.constant 0 : i32
    return %c0_i32, %c0_i32_0 : i32, i32
  }
}

</mosaic_0001>

<llo_original>
// kernel: factorized_reduce.1
$region0: #{factorized_reduce.1}
  #allocation0 [shape = 'u32[]', space=smem, size = 0x4, offset = 0x4, fixed_abs, tag = 'smem constant byte address 0x4 - core index']
  #allocation1 [shape = 'u32[144,128]{1,0:T(1,128)}', space=vmem, size = 0x12000, scoped, tag = 'internal scratch']
  %s0 = inlined_call_operand.vmem [shape: bf16[128,4], index: 0, kind: input, shape index: {}]
  %s1 = inlined_call_operand.vmem [shape: bf16[128,4], index: 1, kind: input, shape index: {}]
  %s2 = inlined_call_operand.vmem [shape: bf16[4,4], index: 2, kind: input, shape index: {}]
  %s3 = inlined_call_operand.vmem [shape: bf16[4,4], index: 3, kind: input, shape index: {}]
  %s4 = inlined_call_operand.vmem [shape: f32[128,8], index: 4, kind: output, shape index: {0}]
  %s5 = inlined_call_operand.vmem [shape: f32[8,8], index: 5, kind: output, shape index: {1}]
  %s6 = inlined_call_operand.vmem [shape: f32[8,8], index: 6, kind: output, shape index: {2}]
  %7 = xla_tuple %s4, %s5, %s6
  %s8 = sld [smem:[#allocation0]]
  $region46: #{factorized_reduce.1} parent=0
    _
  %s10 = ssub.s32 1, %s8
  %s11 = scalar_select 0, %s10, %s8
  // Predicated region
  $region2: #{factorized_reduce.1} parent=0 // pred_check
    _
  $region3: #{factorized_reduce.1} parent=0 // pred_check_branch
    %13 = sbr.rel (0) target = $region5
  $region4: #{factorized_reduce.1} parent=0 // pred_region
    _
  $region5: #{factorized_reduce.1} parent=0 // pred_fallthru
    _
  // Predicated region
  $region6: #{factorized_reduce.1} parent=0 // pred_check
    _
  $region7: #{factorized_reduce.1} parent=0 // pred_check_branch
    %15 = sbr.rel (0) target = $region9
  $region8: #{factorized_reduce.1} parent=0 // pred_region
    _
  $region9: #{factorized_reduce.1} parent=0 // pred_fallthru
    _
  // Predicated region
  $region10: #{factorized_reduce.1} parent=0 // pred_check
    _
  $region11: #{factorized_reduce.1} parent=0 // pred_check_branch
    %17 = sbr.rel (0) target = $region13
  $region12: #{factorized_reduce.1} parent=0 // pred_region
    _
  $region13: #{factorized_reduce.1} parent=0 // pred_fallthru
    _
  // Predicated region
  $region14: #{factorized_reduce.1} parent=0 // pred_check
    _
  $region15: #{factorized_reduce.1} parent=0 // pred_check_branch
    %19 = sbr.rel (0) target = $region17
  $region16: #{factorized_reduce.1} parent=0 // pred_region
    _
  $region17: #{factorized_reduce.1} parent=0 // pred_fallthru
    _
  %v21 = vld [vmem:[%s0] sm:$0xf]
  %v22 = vld [vmem:[%s0 + $0x4] sm:$0xf]
  %v23 = vld [vmem:[%s0 + $0x8] sm:$0xf]
  %v24 = vld [vmem:[%s0 + $0xc] sm:$0xf]
  %v25 = vld [vmem:[%s0 + $0x10] sm:$0xf]
  %v26 = vld [vmem:[%s0 + $0x14] sm:$0xf]
  %v27 = vld [vmem:[%s0 + $0x18] sm:$0xf]
  %v28 = vld [vmem:[%s0 + $0x1c] sm:$0xf]
  %v29 = vld [vmem:[%s0 + $0x20] sm:$0xf]
  %v30 = vld [vmem:[%s0 + $0x24] sm:$0xf]
  %v31 = vld [vmem:[%s0 + $0x28] sm:$0xf]
  %v32 = vld [vmem:[%s0 + $0x2c] sm:$0xf]
  %v33 = vld [vmem:[%s0 + $0x30] sm:$0xf]
  %v34 = vld [vmem:[%s0 + $0x34] sm:$0xf]
  %v35 = vld [vmem:[%s0 + $0x38] sm:$0xf]
  %v36 = vld [vmem:[%s0 + $0x3c] sm:$0xf]
  %v37 = vmax.bf16 %v21, 0
  %v38 = vmax.bf16 %v22, 0
  %v39 = vmax.bf16 %v23, 0
  %v40 = vmax.bf16 %v24, 0
  %v41 = vmax.bf16 %v25, 0
  %v42 = vmax.bf16 %v26, 0
  %v43 = vmax.bf16 %v27, 0
  %v44 = vmax.bf16 %v28, 0
  %v45 = vmax.bf16 %v29, 0
  %v46 = vmax.bf16 %v30, 0
  %v47 = vmax.bf16 %v31, 0
  %v48 = vmax.bf16 %v32, 0
  %v49 = vmax.bf16 %v33, 0
  %v50 = vmax.bf16 %v34, 0
  %v51 = vmax.bf16 %v35, 0
  %v52 = vmax.bf16 %v36, 0
  %v53 = vld [vmem:[%s1] sm:$0xf]
  %v54 = vld [vmem:[%s1 + $0x4] sm:$0xf]
  %v55 = vld [vmem:[%s1 + $0x8] sm:$0xf]
  %v56 = vld [vmem:[%s1 + $0xc] sm:$0xf]
  %v57 = vld [vmem:[%s1 + $0x10] sm:$0xf]
  %v58 = vld [vmem:[%s1 + $0x14] sm:$0xf]
  %v59 = vld [vmem:[%s1 + $0x18] sm:$0xf]
  %v60 = vld [vmem:[%s1 + $0x1c] sm:$0xf]
  %v61 = vld [vmem:[%s1 + $0x20] sm:$0xf]
  %v62 = vld [vmem:[%s1 + $0x24] sm:$0xf]
  %v63 = vld [vmem:[%s1 + $0x28] sm:$0xf]
  %v64 = vld [vmem:[%s1 + $0x2c] sm:$0xf]
  %v65 = vld [vmem:[%s1 + $0x30] sm:$0xf]
  %v66 = vld [vmem:[%s1 + $0x34] sm:$0xf]
  %v67 = vld [vmem:[%s1 + $0x38] sm:$0xf]
  %v68 = vld [vmem:[%s1 + $0x3c] sm:$0xf]
  %v69 = vmax.bf16 %v53, 0
  %v70 = vmax.bf16 %v54, 0
  %v71 = vmax.bf16 %v55, 0
  %v72 = vmax.bf16 %v56, 0
  %v73 = vmax.bf16 %v57, 0
  %v74 = vmax.bf16 %v58, 0
  %v75 = vmax.bf16 %v59, 0
  %v76 = vmax.bf16 %v60, 0
  %v77 = vmax.bf16 %v61, 0
  %v78 = vmax.bf16 %v62, 0
  %v79 = vmax.bf16 %v63, 0
  %v80 = vmax.bf16 %v64, 0
  %v81 = vmax.bf16 %v65, 0
  %v82 = vmax.bf16 %v66, 0
  %v83 = vmax.bf16 %v67, 0
  %v84 = vmax.bf16 %v68, 0
  %v85 = vld [vmem:[%s2] sm:$0x3]
  %v102 = vunpack.c.l.b16 %v37
  %v103 = vunpack.c.l.b16 %v38
  %v104 = vunpack.c.l.b16 %v39
  %v105 = vunpack.c.l.b16 %v40
  %v106 = vunpack.c.l.b16 %v41
  %v107 = vunpack.c.l.b16 %v42
  %v108 = vunpack.c.l.b16 %v43
  %v109 = vunpack.c.l.b16 %v44
  %v110 = vunpack.c.l.b16 %v45
  %v111 = vunpack.c.l.b16 %v46
  %v112 = vunpack.c.l.b16 %v47
  %v113 = vunpack.c.l.b16 %v48
  %v114 = vunpack.c.l.b16 %v49
  %v115 = vunpack.c.l.b16 %v50
  %v116 = vunpack.c.l.b16 %v51
  %v117 = vunpack.c.l.b16 %v52
  %v118 = vpack.c.b16 %v103, %v102
  %v119 = vpack.c.b16 %v105, %v104
  %v120 = vpack.c.b16 %v107, %v106
  %v121 = vpack.c.b16 %v109, %v108
  %v122 = vpack.c.b16 %v111, %v110
  %v123 = vpack.c.b16 %v113, %v112
  %v124 = vpack.c.b16 %v115, %v114
  %v125 = vpack.c.b16 %v117, %v116
  %vm126 = vcmask 31744
  %v128 = vsel %vm126, %v118, 0
  %v131 = vsel %vm126, %v119, 0
  %v134 = vsel %vm126, %v120, 0
  %v137 = vsel %vm126, %v121, 0
  %v140 = vsel %vm126, %v122, 0
  %v143 = vsel %vm126, %v123, 0
  %v146 = vsel %vm126, %v124, 0
  %v149 = vsel %vm126, %v125, 0
  %vm151 = vcmask 1041408
  %v153 = vsel %vm151, %v85, 0
  %155 = vmatprep.subr.bf16.mxu0 0
  %156 = vmatpush1.bf16.msra.mxu0 %v153
  %157 = vmatprep.subr.bf16.mxu0 0
  %158 = vmatpush1.bf16.msra.mxu0 0
  %159 = vmatprep.subr.bf16.mxu0 0
  %160 = vmatpush1.bf16.msra.mxu0 0
  %161 = vmatprep.subr.bf16.mxu0 0
  %162 = vmatpush1.bf16.msra.mxu0 0
  %163 = vmatprep.subr.bf16.mxu0 0
  %164 = vmatpush1.bf16.msra.mxu0 0
  %165 = vmatprep.subr.bf16.mxu0 0
  %166 = vmatpush1.bf16.msra.mxu0 0
  %167 = vmatprep.subr.bf16.mxu0 0
  %168 = vmatpush1.bf16.msra.mxu0 0
  %169 = vmatprep.subr.bf16.mxu0 0
  %170 = vmatpush1.bf16.msra.mxu0 0
  %171 = vmatprep.subr.bf16.mxu0 0
  %172 = vmatpush1.bf16.msra.mxu0 0
  %173 = vmatprep.subr.bf16.mxu0 0
  %174 = vmatpush1.bf16.msra.mxu0 0
  %175 = vmatprep.subr.bf16.mxu0 0
  %176 = vmatpush1.bf16.msra.mxu0 0
  %177 = vmatprep.subr.bf16.mxu0 0
  %178 = vmatpush1.bf16.msra.mxu0 0
  %179 = vmatprep.subr.bf16.mxu0 0
  %180 = vmatpush1.bf16.msra.mxu0 0
  %181 = vmatprep.subr.bf16.mxu0 0
  %182 = vmatpush1.bf16.msra.mxu0 0
  %183 = vmatprep.subr.bf16.mxu0 0
  %184 = vmatpush1.bf16.msra.mxu0 0
  %185 = vmatprep.subr.bf16.mxu0 0
  %186 = vmatpush1.bf16.msra.mxu0 0
  %187 = vmatprep.mubr.bf16.mxu0 0
  %188 = vmatmul.mubr.bf16.gmra.mrb[0].mxu0 %v128
  %v189 = vpop.f32.mrb[0].mxu0
  %v190 = vadd.f32 0.0, %v189
  %v191 = vpop.f32.mrb[0].mxu0
  %v192 = vpop.f32.mrb[0].mxu0
  %v193 = vadd.f32 0.0, %v192
  %v194 = vpop.f32.mrb[0].mxu0
  %195 = vmatprep.mubr.bf16.mxu0 0
  %196 = vmatmul.mubr.bf16.gmra.mrb[0].mxu0 %v131
  %v197 = vpop.f32.mrb[0].mxu0
  %v198 = vadd.f32 0.0, %v197
  %v199 = vpop.f32.mrb[0].mxu0
  %v200 = vpop.f32.mrb[0].mxu0
  %v201 = vadd.f32 0.0, %v200
  %v202 = vpop.f32.mrb[0].mxu0
  %203 = vmatprep.mubr.bf16.mxu0 0
  %204 = vmatmul.mubr.bf16.gmra.mrb[0].mxu0 %v134
  %v205 = vpop.f32.mrb[0].mxu0
  %v206 = vadd.f32 0.0, %v205
  %v207 = vpop.f32.mrb[0].mxu0
  %v208 = vpop.f32.mrb[0].mxu0
  %v209 = vadd.f32 0.0, %v208
  %v210 = vpop.f32.mrb[0].mxu0
  %211 = vmatprep.mubr.bf16.mxu0 0
  %212 = vmatmul.mubr.bf16.gmra.mrb[0].mxu0 %v137
  %v213 = vpop.f32.mrb[0].mxu0
  %v214 = vadd.f32 0.0, %v213
  %v215 = vpop.f32.mrb[0].mxu0
  %v216 = vpop.f32.mrb[0].mxu0
  %v217 = vadd.f32 0.0, %v216
  %v218 = vpop.f32.mrb[0].mxu0
  %219 = vmatprep.mubr.bf16.mxu0 0
  %220 = vmatmul.mubr.bf16.gmra.mrb[0].mxu0 %v140
  %v221 = vpop.f32.mrb[0].mxu0
  %v222 = vadd.f32 0.0, %v221
  %v223 = vpop.f32.mrb[0].mxu0
  %v224 = vpop.f32.mrb[0].mxu0
  %v225 = vadd.f32 0.0, %v224
  %v226 = vpop.f32.mrb[0].mxu0
  %227 = vmatprep.mubr.bf16.mxu0 0
  %228 = vmatmul.mubr.bf16.gmra.mrb[0].mxu0 %v143
  %v229 = vpop.f32.mrb[0].mxu0
  %v230 = vadd.f32 0.0, %v229
  %v231 = vpop.f32.mrb[0].mxu0
  %v232 = vpop.f32.mrb[0].mxu0
  %v233 = vadd.f32 0.0, %v232
  %v234 = vpop.f32.mrb[0].mxu0
  %235 = vmatprep.mubr.bf16.mxu0 0
  %236 = vmatmul.mubr.bf16.gmra.mrb[0].mxu0 %v146
  %v237 = vpop.f32.mrb[0].mxu0
  %v238 = vadd.f32 0.0, %v237
  %v239 = vpop.f32.mrb[0].mxu0
  %v240 = vpop.f32.mrb[0].mxu0
  %v241 = vadd.f32 0.0, %v240
  %v242 = vpop.f32.mrb[0].mxu0
  %243 = vmatprep.mubr.bf16.mxu0 0
  %244 = vmatmul.mubr.bf16.gmra.mrb[0].mxu0 %v149
  %v245 = vpop.f32.mrb[0].mxu0
  %v246 = vadd.f32 0.0, %v245
  %v247 = vpop.f32.mrb[0].mxu0
  %v248 = vpop.f32.mrb[0].mxu0
  %v249 = vadd.f32 0.0, %v248
  %v250 = vpop.f32.mrb[0].mxu0
  %251 = vdwg.mxu0
  %v252 = vld [vmem:[%s3] sm:$0x3]
  %v269 = vunpack.c.l.b16 %v69
  %v270 = vunpack.c.l.b16 %v70
  %v271 = vunpack.c.l.b16 %v71
  %v272 = vunpack.c.l.b16 %v72
  %v273 = vunpack.c.l.b16 %v73
  %v274 = vunpack.c.l.b16 %v74
  %v275 = vunpack.c.l.b16 %v75
  %v276 = vunpack.c.l.b16 %v76
  %v277 = vunpack.c.l.b16 %v77
  %v278 = vunpack.c.l.b16 %v78
  %v279 = vunpack.c.l.b16 %v79
  %v280 = vunpack.c.l.b16 %v80
  %v281 = vunpack.c.l.b16 %v81
  %v282 = vunpack.c.l.b16 %v82
  %v283 = vunpack.c.l.b16 %v83
  %v284 = vunpack.c.l.b16 %v84
  %v285 = vpack.c.b16 %v270, %v269
  %v286 = vpack.c.b16 %v272, %v271
  %v287 = vpack.c.b16 %v274, %v273
  %v288 = vpack.c.b16 %v276, %v275
  %v289 = vpack.c.b16 %v278, %v277
  %v290 = vpack.c.b16 %v280, %v279
  %v291 = vpack.c.b16 %v282, %v281
  %v292 = vpack.c.b16 %v284, %v283
  %v294 = vsel %vm126, %v285, 0
  %v297 = vsel %vm126, %v286, 0
  %v300 = vsel %vm126, %v287, 0
  %v303 = vsel %vm126, %v288, 0
  %v306 = vsel %vm126, %v289, 0
  %v309 = vsel %vm126, %v290, 0
  %v312 = vsel %vm126, %v291, 0
  %v315 = vsel %vm126, %v292, 0
  %v318 = vsel %vm151, %v252, 0
  %320 = vmatprep.subr.bf16.mxu0 0
  %321 = vmatpush1.bf16.msra.mxu0 %v318
  %322 = vmatprep.subr.bf16.mxu0 0
  %323 = vmatpush1.bf16.msra.mxu0 0
  %324 = vmatprep.subr.bf16.mxu0 0
  %325 = vmatpush1.bf16.msra.mxu0 0
  %326 = vmatprep.subr.bf16.mxu0 0
  %327 = vmatpush1.bf16.msra.mxu0 0
  %328 = vmatprep.subr.bf16.mxu0 0
  %329 = vmatpush1.bf16.msra.mxu0 0
  %330 = vmatprep.subr.bf16.mxu0 0
  %331 = vmatpush1.bf16.msra.mxu0 0
  %332 = vmatprep.subr.bf16.mxu0 0
  %333 = vmatpush1.bf16.msra.mxu0 0
  %334 = vmatprep.subr.bf16.mxu0 0
  %335 = vmatpush1.bf16.msra.mxu0 0
  %336 = vmatprep.subr.bf16.mxu0 0
  %337 = vmatpush1.bf16.msra.mxu0 0
  %338 = vmatprep.subr.bf16.mxu0 0
  %339 = vmatpush1.bf16.msra.mxu0 0
  %340 = vmatprep.subr.bf16.mxu0 0
  %341 = vmatpush1.bf16.msra.mxu0 0
  %342 = vmatprep.subr.bf16.mxu0 0
  %343 = vmatpush1.bf16.msra.mxu0 0
  %344 = vmatprep.subr.bf16.mxu0 0
  %345 = vmatpush1.bf16.msra.mxu0 0
  %346 = vmatprep.subr.bf16.mxu0 0
  %347 = vmatpush1.bf16.msra.mxu0 0
  %348 = vmatprep.subr.bf16.mxu0 0
  %349 = vmatpush1.bf16.msra.mxu0 0
  %350 = vmatprep.subr.bf16.mxu0 0
  %351 = vmatpush1.bf16.msra.mxu0 0
  %352 = vmatprep.mubr.bf16.mxu0 0
  %353 = vmatmul.mubr.bf16.gmra.mrb[0].mxu0 %v294
  %v354 = vpop.f32.mrb[0].mxu0
  %v355 = vadd.f32 0.0, %v354
  %v356 = vpop.f32.mrb[0].mxu0
  %v357 = vpop.f32.mrb[0].mxu0
  %v358 = vadd.f32 0.0, %v357
  %v359 = vpop.f32.mrb[0].mxu0
  %360 = vmatprep.mubr.bf16.mxu0 0
  %361 = vmatmul.mubr.bf16.gmra.mrb[0].mxu0 %v297
  %v362 = vpop.f32.mrb[0].mxu0
  %v363 = vadd.f32 0.0, %v362
  %v364 = vpop.f32.mrb[0].mxu0
  %v365 = vpop.f32.mrb[0].mxu0
  %v366 = vadd.f32 0.0, %v365
  %v367 = vpop.f32.mrb[0].mxu0
  %368 = vmatprep.mubr.bf16.mxu0 0
  %369 = vmatmul.mubr.bf16.gmra.mrb[0].mxu0 %v300
  %v370 = vpop.f32.mrb[0].mxu0
  %v371 = vadd.f32 0.0, %v370
  %v372 = vpop.f32.mrb[0].mxu0
  %v373 = vpop.f32.mrb[0].mxu0
  %v374 = vadd.f32 0.0, %v373
  %v375 = vpop.f32.mrb[0].mxu0
  %376 = vmatprep.mubr.bf16.mxu0 0
  %377 = vmatmul.mubr.bf16.gmra.mrb[0].mxu0 %v303
  %v378 = vpop.f32.mrb[0].mxu0
  %v379 = vadd.f32 0.0, %v378
  %v380 = vpop.f32.mrb[0].mxu0
  %v381 = vpop.f32.mrb[0].mxu0
  %v382 = vadd.f32 0.0, %v381
  %v383 = vpop.f32.mrb[0].mxu0
  %384 = vmatprep.mubr.bf16.mxu0 0
  %385 = vmatmul.mubr.bf16.gmra.mrb[0].mxu0 %v306
  %v386 = vpop.f32.mrb[0].mxu0
  %v387 = vadd.f32 0.0, %v386
  %v388 = vpop.f32.mrb[0].mxu0
  %v389 = vpop.f32.mrb[0].mxu0
  %v390 = vadd.f32 0.0, %v389
  %v391 = vpop.f32.mrb[0].mxu0
  %392 = vmatprep.mubr.bf16.mxu0 0
  %393 = vmatmul.mubr.bf16.gmra.mrb[0].mxu0 %v309
  %v394 = vpop.f32.mrb[0].mxu0
  %v395 = vadd.f32 0.0, %v394
  %v396 = vpop.f32.mrb[0].mxu0
  %v397 = vpop.f32.mrb[0].mxu0
  %v398 = vadd.f32 0.0, %v397
  %v399 = vpop.f32.mrb[0].mxu0
  %400 = vmatprep.mubr.bf16.mxu0 0
  %401 = vmatmul.mubr.bf16.gmra.mrb[0].mxu0 %v312
  %v402 = vpop.f32.mrb[0].mxu0
  %v403 = vadd.f32 0.0, %v402
  %v404 = vpop.f32.mrb[0].mxu0
  %v405 = vpop.f32.mrb[0].mxu0
  %v406 = vadd.f32 0.0, %v405
  %v407 = vpop.f32.mrb[0].mxu0
  %408 = vmatprep.mubr.bf16.mxu0 0
  %409 = vmatmul.mubr.bf16.gmra.mrb[0].mxu0 %v315
  %v410 = vpop.f32.mrb[0].mxu0
  %v411 = vadd.f32 0.0, %v410
  %v412 = vpop.f32.mrb[0].mxu0
  %v413 = vpop.f32.mrb[0].mxu0
  %v414 = vadd.f32 0.0, %v413
  %v415 = vpop.f32.mrb[0].mxu0
  %416 = vdwg.mxu0
  %433 = vrot.lane.b32.xlu0 %v355, 4
  %v434 = vpop.permute.xlu0 %433
  %435 = vrot.lane.b32.xlu0 %v358, 4
  %v436 = vpop.permute.xlu0 %435
  %437 = vrot.lane.b32.xlu0 %v363, 4
  %v438 = vpop.permute.xlu0 %437
  %439 = vrot.lane.b32.xlu0 %v366, 4
  %v440 = vpop.permute.xlu0 %439
  %441 = vrot.lane.b32.xlu0 %v371, 4
  %v442 = vpop.permute.xlu0 %441
  %443 = vrot.lane.b32.xlu0 %v374, 4
  %v444 = vpop.permute.xlu0 %443
  %445 = vrot.lane.b32.xlu0 %v379, 4
  %v446 = vpop.permute.xlu0 %445
  %447 = vrot.lane.b32.xlu0 %v382, 4
  %v448 = vpop.permute.xlu0 %447
  %449 = vrot.lane.b32.xlu0 %v387, 4
  %v450 = vpop.permute.xlu0 %449
  %451 = vrot.lane.b32.xlu0 %v390, 4
  %v452 = vpop.permute.xlu0 %451
  %453 = vrot.lane.b32.xlu0 %v395, 4
  %v454 = vpop.permute.xlu0 %453
  %455 = vrot.lane.b32.xlu0 %v398, 4
  %v456 = vpop.permute.xlu0 %455
  %457 = vrot.lane.b32.xlu0 %v403, 4
  %v458 = vpop.permute.xlu0 %457
  %459 = vrot.lane.b32.xlu0 %v406, 4
  %v460 = vpop.permute.xlu0 %459
  %461 = vrot.lane.b32.xlu0 %v411, 4
  %v462 = vpop.permute.xlu0 %461
  %463 = vrot.lane.b32.xlu0 %v414, 4
  %v464 = vpop.permute.xlu0 %463
  %v481 = vsel %vm126, %v190, %v434
  %v482 = vsel %vm126, %v193, %v436
  %v483 = vsel %vm126, %v198, %v438
  %v484 = vsel %vm126, %v201, %v440
  %v485 = vsel %vm126, %v206, %v442
  %v486 = vsel %vm126, %v209, %v444
  %v487 = vsel %vm126, %v214, %v446
  %v488 = vsel %vm126, %v217, %v448
  %v489 = vsel %vm126, %v222, %v450
  %v490 = vsel %vm126, %v225, %v452
  %v491 = vsel %vm126, %v230, %v454
  %v492 = vsel %vm126, %v233, %v456
  %v493 = vsel %vm126, %v238, %v458
  %v494 = vsel %vm126, %v241, %v460
  %v495 = vsel %vm126, %v246, %v462
  %v496 = vsel %vm126, %v249, %v464
  %vm497 = vcmask 64512
  %498 = vst.msk [vmem:[%s4] sm:$0xff] %vm497, %v481
  %499 = vst.msk [vmem:[%s4 + $0x8] sm:$0xff] %vm497, %v482
  %500 = vst.msk [vmem:[%s4 + $0x10] sm:$0xff] %vm497, %v483
  %501 = vst.msk [vmem:[%s4 + $0x18] sm:$0xff] %vm497, %v484
  %502 = vst.msk [vmem:[%s4 + $0x20] sm:$0xff] %vm497, %v485
  %503 = vst.msk [vmem:[%s4 + $0x28] sm:$0xff] %vm497, %v486
  %504 = vst.msk [vmem:[%s4 + $0x30] sm:$0xff] %vm497, %v487
  %505 = vst.msk [vmem:[%s4 + $0x38] sm:$0xff] %vm497, %v488
  %506 = vst.msk [vmem:[%s4 + $0x40] sm:$0xff] %vm497, %v489
  %507 = vst.msk [vmem:[%s4 + $0x48] sm:$0xff] %vm497, %v490
  %508 = vst.msk [vmem:[%s4 + $0x50] sm:$0xff] %vm497, %v491
  %509 = vst.msk [vmem:[%s4 + $0x58] sm:$0xff] %vm497, %v492
  %510 = vst.msk [vmem:[%s4 + $0x60] sm:$0xff] %vm497, %v493
  %511 = vst.msk [vmem:[%s4 + $0x68] sm:$0xff] %vm497, %v494
  %512 = vst.msk [vmem:[%s4 + $0x70] sm:$0xff] %vm497, %v495
  %513 = vst.msk [vmem:[%s4 + $0x78] sm:$0xff] %vm497, %v496
  %p514 = scmp.eq.s32.totalorder 0, 0
  // Predicated region
  $region18: #{factorized_reduce.1} parent=0 // pred_check
    %p515 = pneg %p514
  $region19: #{factorized_reduce.1} parent=0 // pred_check_branch
    %517 = sbr.rel (%p515) target = $region21
  $region20: #{factorized_reduce.1} parent=0 // pred_region
    %518 = vst.msk [vmem:[%s5] sm:$0xff] %vm497, 0.0
    %519 = vst.msk [vmem:[%s6] sm:$0xff] %vm497, 0.0
  $region21: #{factorized_reduce.1} parent=0 // pred_fallthru
    _
  %v520 = vld [vmem:[%s5] sm:$0xff]
  %v521 = vsel %vm497, %v481, 0.0
  %v522 = vsel %vm497, %v482, 0.0
  %v523 = vadd.f32 %v521, %v522
  %v524 = vsel %vm497, %v483, 0.0
  %v525 = vadd.f32 %v523, %v524
  %v526 = vsel %vm497, %v484, 0.0
  %v527 = vadd.f32 %v525, %v526
  %v528 = vsel %vm497, %v485, 0.0
  %v529 = vadd.f32 %v527, %v528
  %v530 = vsel %vm497, %v486, 0.0
  %v531 = vadd.f32 %v529, %v530
  %v532 = vsel %vm497, %v487, 0.0
  %v533 = vadd.f32 %v531, %v532
  %v534 = vsel %vm497, %v488, 0.0
  %v535 = vadd.f32 %v533, %v534
  %v536 = vsel %vm497, %v489, 0.0
  %v537 = vadd.f32 %v535, %v536
  %v538 = vsel %vm497, %v490, 0.0
  %v539 = vadd.f32 %v537, %v538
  %v540 = vsel %vm497, %v491, 0.0
  %v541 = vadd.f32 %v539, %v540
  %v542 = vsel %vm497, %v492, 0.0
  %v543 = vadd.f32 %v541, %v542
  %v544 = vsel %vm497, %v493, 0.0
  %v545 = vadd.f32 %v543, %v544
  %v546 = vsel %vm497, %v494, 0.0
  %v547 = vadd.f32 %v545, %v546
  %v548 = vsel %vm497, %v495, 0.0
  %v549 = vadd.f32 %v547, %v548
  %v550 = vsel %vm497, %v496, 0.0
  %v551 = vadd.f32 %v549, %v550
  %v552 = vadd.f32 %v520, %v551
  %553 = vst.msk [vmem:[%s5] sm:$0xff] %vm497, %v552
  %v554 = vld [vmem:[%s6] sm:$0xff]
  %v555 = vmul.f32 %v481, %v481
  %v556 = vmul.f32 %v482, %v482
  %v557 = vmul.f32 %v483, %v483
  %v558 = vmul.f32 %v484, %v484
  %v559 = vmul.f32 %v485, %v485
  %v560 = vmul.f32 %v486, %v486
  %v561 = vmul.f32 %v487, %v487
  %v562 = vmul.f32 %v488, %v488
  %v563 = vmul.f32 %v489, %v489
  %v564 = vmul.f32 %v490, %v490
  %v565 = vmul.f32 %v491, %v491
  %v566 = vmul.f32 %v492, %v492
  %v567 = vmul.f32 %v493, %v493
  %v568 = vmul.f32 %v494, %v494
  %v569 = vmul.f32 %v495, %v495
  %v570 = vmul.f32 %v496, %v496
  %v571 = vsel %vm497, %v555, 0.0
  %v572 = vsel %vm497, %v556, 0.0
  %v573 = vadd.f32 %v571, %v572
  %v574 = vsel %vm497, %v557, 0.0
  %v575 = vadd.f32 %v573, %v574
  %v576 = vsel %vm497, %v558, 0.0
  %v577 = vadd.f32 %v575, %v576
  %v578 = vsel %vm497, %v559, 0.0
  %v579 = vadd.f32 %v577, %v578
  %v580 = vsel %vm497, %v560, 0.0
  %v581 = vadd.f32 %v579, %v580
  %v582 = vsel %vm497, %v561, 0.0
  %v583 = vadd.f32 %v581, %v582
  %v584 = vsel %vm497, %v562, 0.0
  %v585 = vadd.f32 %v583, %v584
  %v586 = vsel %vm497, %v563, 0.0
  %v587 = vadd.f32 %v585, %v586
  %v588 = vsel %vm497, %v564, 0.0
  %v589 = vadd.f32 %v587, %v588
  %v590 = vsel %vm497, %v565, 0.0
  %v591 = vadd.f32 %v589, %v590
  %v592 = vsel %vm497, %v566, 0.0
  %v593 = vadd.f32 %v591, %v592
  %v594 = vsel %vm497, %v567, 0.0
  %v595 = vadd.f32 %v593, %v594
  %v596 = vsel %vm497, %v568, 0.0
  %v597 = vadd.f32 %v595, %v596
  %v598 = vsel %vm497, %v569, 0.0
  %v599 = vadd.f32 %v597, %v598
  %v600 = vsel %vm497, %v570, 0.0
  %v601 = vadd.f32 %v599, %v600
  %v602 = vadd.f32 %v554, %v601
  %603 = vst.msk [vmem:[%s6] sm:$0xff] %vm497, %v602
  // Predicated region
  $region22: #{factorized_reduce.1} parent=0 // pred_check
    _
  $region23: #{factorized_reduce.1} parent=0 // pred_check_branch
    %605 = sbr.rel (0) target = $region25
  $region24: #{factorized_reduce.1} parent=0 // pred_region
    _
  $region25: #{factorized_reduce.1} parent=0 // pred_fallthru
    _
  // Predicated region
  $region26: #{factorized_reduce.1} parent=0 // pred_check
    _
  $region27: #{factorized_reduce.1} parent=0 // pred_check_branch
    %607 = sbr.rel (0) target = $region29
  $region28: #{factorized_reduce.1} parent=0 // pred_region
    _
  $region29: #{factorized_reduce.1} parent=0 // pred_fallthru
    _
  // Predicated region
  $region30: #{factorized_reduce.1} parent=0 // pred_check
    _
  $region31: #{factorized_reduce.1} parent=0 // pred_check_branch
    %609 = sbr.rel (0) target = $region33
  $region32: #{factorized_reduce.1} parent=0 // pred_region
    _
  $region33: #{factorized_reduce.1} parent=0 // pred_fallthru
    _
  // Predicated region
  $region34: #{factorized_reduce.1} parent=0 // pred_check
    _
  $region35: #{factorized_reduce.1} parent=0 // pred_check_branch
    %611 = sbr.rel (0) target = $region37
  $region36: #{factorized_reduce.1} parent=0 // pred_region
    _
  $region37: #{factorized_reduce.1} parent=0 // pred_fallthru
    _
  // Predicated region
  $region38: #{factorized_reduce.1} parent=0 // pred_check
    _
  $region39: #{factorized_reduce.1} parent=0 // pred_check_branch
    %613 = sbr.rel (0) target = $region41
  $region40: #{factorized_reduce.1} parent=0 // pred_region
    _
  $region41: #{factorized_reduce.1} parent=0 // pred_fallthru
    _
  // Predicated region
  $region42: #{factorized_reduce.1} parent=0 // pred_check
    _
  $region43: #{factorized_reduce.1} parent=0 // pred_check_branch
    %615 = sbr.rel (0) target = $region45
  $region44: #{factorized_reduce.1} parent=0 // pred_region
    _
  $region45: #{factorized_reduce.1} parent=0 // pred_fallthru
    _

</llo_original>
